<compile_context>
chip_gen: v7x
topology: tpu7x:2x2x1
jax: 0.10.0
libtpu: 0.0.40
codegen_flags: <defaults>
</compile_context>

<pallas_src>
import jax
import jax.numpy as jnp
from jax.experimental import pallas as pl
from jax.experimental.pallas import tpu as pltpu

_MiB = 1024 * 1024


# --------------------------------------------------------------------------
# Kernels
# --------------------------------------------------------------------------
def _fused_kernel(x_ref, p_ref, o_ref):
    """Whole-tensor resident path: exact centered BN stats + gating.

    p = [w0/C, w1, gamma, beta, eps]  (SMEM scalars)
    """
    x = x_ref[...]                                                    # (B, C, HW)
    s = jnp.sum(x, axis=1, keepdims=True, dtype=jnp.float32)         # (B, 1, HW) f32
    mx = jnp.max(x, axis=1, keepdims=True).astype(jnp.float32)       # (B, 1, HW) f32
    att = p_ref[0] * s + p_ref[1] * mx                               # w0*avg + w1*max
    mu = jnp.mean(att)
    var = jnp.mean((att - mu) * (att - mu))
    att_n = (att - mu) * jax.lax.rsqrt(var + p_ref[4]) * p_ref[2] + p_ref[3]
    gate = jax.nn.sigmoid(att_n)
    # Gate is downcast once to the input dtype; gating multiply runs in the
    # input dtype (documented decision; exact for f32 inputs).
    o_ref[...] = (x * gate.astype(x.dtype)).astype(o_ref.dtype)


def _stats_kernel(x_ref, w_ref, sum_ref, sq_ref):
    """Per-batch lane-wise sum / sum-of-squares of att over all HW tiles.

    w = [w0/C, w1] (SMEM).  sum_ref/sq_ref: (1, 1, TN) f32, resident per batch.
    """
    @pl.when(pl.program_id(1) == 0)
    def _():
        sum_ref[...] = jnp.zeros_like(sum_ref)
        sq_ref[...] = jnp.zeros_like(sq_ref)

    x = x_ref[...]                                                    # (1, C, TN)
    # Accumulate the channel sum directly in f32 (no full-block upcast of x).
    s = jnp.sum(x, axis=1, keepdims=True, dtype=jnp.float32)          # (1, 1, TN)
    mx = jnp.max(x, axis=1, keepdims=True).astype(jnp.float32)        # (1, 1, TN)
    att = w_ref[0] * s + w_ref[1] * mx
    sum_ref[...] += att
    sq_ref[...] += att * att


def _gate_kernel(x_ref, p_ref, o_ref):
    """out = x * sigmoid(p0*sum_C(x) + p1*max_C(x) + p2)   (BN folded into p)."""
    x = x_ref[...]                                                    # (1, C, TN)
    s = jnp.sum(x, axis=1, keepdims=True, dtype=jnp.float32)          # (1, 1, TN)
    mx = jnp.max(x, axis=1, keepdims=True).astype(jnp.float32)        # (1, 1, TN)
    att = p_ref[0] * s + p_ref[1] * mx + p_ref[2]
    gate = jax.nn.sigmoid(att)
    o_ref[...] = (x * gate.astype(x.dtype)).astype(o_ref.dtype)


# --------------------------------------------------------------------------
# Tiling / capacity helpers
# --------------------------------------------------------------------------
def _vmem_capacity_bytes():
    """Generation-aware VMEM capacity; conservative fallback (v7x = 64 MiB)."""
    try:
        cap = int(pltpu.get_tpu_info().vmem_capacity_bytes)
        if cap >= 16 * _MiB:
            return cap
    except Exception:
        pass
    return 64 * _MiB


def _choose_hw_tile(hw_padded, c, itemsize, target_bytes):
    """Lane tile: multiple of 128 dividing hw_padded, ~target_bytes of x/block."""
    tn = (target_bytes // max(1, c * itemsize)) // 128 * 128
    tn = max(128, min(hw_padded, tn))
    while hw_padded % tn != 0:        # keep tiles exact (no partial edge blocks)
        tn -= 128
    return tn, hw_padded // tn


# --------------------------------------------------------------------------
# Wrapper
# --------------------------------------------------------------------------
def light_spatial_attention(x_nchw, conv_w, *, gamma=1.0, beta=0.0, eps=1e-5,
                            force_tiled=False):
    """x_nchw: (B, C, H, W); conv_w: Conv2d(2,1,1,bias=False) weights (2 elems)."""
    B, C, H, W = x_nchw.shape
    HW = H * W
    dtype = x_nchw.dtype
    itemsize = jnp.dtype(dtype).itemsize
    x = x_nchw.reshape(B, C, HW)
    w = jnp.asarray(conv_w, jnp.float32).reshape(2)
    inv_c = jnp.float32(1.0 / C)

    cap = _vmem_capacity_bytes()

    # ---------------- Small-input fused fast path (1 read + 1 write of x) ----
    att_f32_bytes = B * HW * 4
    fused_need = 2 * B * C * HW * itemsize + 4 * att_f32_bytes
    if (not force_tiled) and fused_need <= min(cap // 3, 24 * _MiB):
        params = jnp.stack([w[0] * inv_c, w[1],
                            jnp.float32(gamma), jnp.float32(beta),
                            jnp.float32(eps)])
        out = pl.pallas_call(
            _fused_kernel,
            in_specs=[pl.BlockSpec(memory_space=pltpu.MemorySpace.VMEM),
                      pl.BlockSpec(memory_space=pltpu.MemorySpace.SMEM)],
            out_specs=pl.BlockSpec(memory_space=pltpu.MemorySpace.VMEM),
            out_shape=jax.ShapeDtypeStruct((B, C, HW), dtype),
            compiler_params=pltpu.CompilerParams(
                vmem_limit_bytes=int(min(cap - 2 * _MiB, fused_need + 4 * _MiB))),
            cost_estimate=pl.CostEstimate(
                flops=int((2 * C + 10) * B * HW),
                transcendentals=int(B * HW),
                bytes_accessed=int(2 * B * C * HW * itemsize)),
        )(x, params)
        return out.reshape(B, C, H, W)

    # ---------------- Tiled two-pass path ------------------------------------
    HWp = ((HW + 127) // 128) * 128
    if HWp != HW:
        # Zero padding: att on padded lanes is exactly 0 -> contributes 0 to
        # both sum and sum-of-squares; the stats below divide by the true count.
        x = jnp.pad(x, ((0, 0), (0, 0), (0, HWp - HW)))

    # Per-pass tile targets (pass 1 only double-buffers the input block;
    # pass 2 double-buffers input + output), capped for v7x's 64 MiB VMEM.
    blk1_target = int(min(cap // 5, 16 * _MiB))
    blk2_target = int(min(cap // 12, 8 * _MiB))
    TN1, T1 = _choose_hw_tile(HWp, C, itemsize, blk1_target)
    TN2, T2 = _choose_hw_tile(HWp, C, itemsize, blk2_target)
    blk1_bytes = C * TN1 * itemsize
    blk2_bytes = C * TN2 * itemsize

    smem_spec = pl.BlockSpec(memory_space=pltpu.MemorySpace.SMEM)

    # ---- Pass 1: per-batch lane-wise partial sums of att.
    # Per-batch accumulators (index_map (b, 0, 0)) make the batch axis safe to
    # shard across megacores; the HW-tile axis is the reduction axis (last).
    w1_params = jnp.stack([w[0] * inv_c, w[1]])
    acc_spec = pl.BlockSpec((1, 1, TN1), lambda b, t: (b, 0, 0))
    att_sum, att_sq = pl.pallas_call(
        _stats_kernel,
        grid=(B, T1),
        in_specs=[pl.BlockSpec((1, C, TN1), lambda b, t: (b, 0, t)), smem_spec],
        out_specs=(acc_spec, acc_spec),
        out_shape=(jax.ShapeDtypeStruct((B, 1, TN1), jnp.float32),
                   jax.ShapeDtypeStruct((B, 1, TN1), jnp.float32)),
        compiler_params=pltpu.CompilerParams(
            dimension_semantics=("parallel", "arbitrary"),
            vmem_limit_bytes=int(min(cap - 2 * _MiB, 2 * blk1_bytes + 6 * _MiB))),
        cost_estimate=pl.CostEstimate(
            flops=int((C + 6) * B * HWp),
            transcendentals=0,
            bytes_accessed=int(B * C * HWp * itemsize + 2 * B * TN1 * 4)),
    )(x, w1_params)

    # ---- Finalize train-mode BN batch stats (biased var) and fold the affine
    # into the 1x1 conv:  gate = sigmoid(p0*sum_C + p1*max_C + p2).
    # TODO(synk): E[att^2]-E[att]^2 in f32 can lose precision when |mean|>>std;
    # accepted here (accumulate-then-finalize design), clamped at 0.
    n = jnp.float32(B * HW)
    mu = jnp.sum(att_sum) / n
    var = jnp.maximum(jnp.sum(att_sq) / n - mu * mu, 0.0)
    scale = jnp.float32(gamma) * jax.lax.rsqrt(var + jnp.float32(eps))
    shift = jnp.float32(beta) - mu * scale
    p2 = jnp.stack([w[0] * inv_c * scale, w[1] * scale, shift])       # (3,) f32

    # ---- Pass 2: tiled, pipelined, lane-dense gating (megacore-parallel).
    out = pl.pallas_call(
        _gate_kernel,
        grid=(B, T2),
        in_specs=[pl.BlockSpec((1, C, TN2), lambda b, t: (b, 0, t)), smem_spec],
        out_specs=pl.BlockSpec((1, C, TN2), lambda b, t: (b, 0, t)),
        out_shape=jax.ShapeDtypeStruct((B, C, HWp), dtype),
        compiler_params=pltpu.CompilerParams(
            dimension_semantics=("parallel", "parallel"),
            vmem_limit_bytes=int(min(cap - 2 * _MiB, 4 * blk2_bytes + 8 * _MiB))),
        cost_estimate=pl.CostEstimate(
            flops=int((2 * C + 8) * B * HWp),
            transcendentals=int(B * HWp),
            bytes_accessed=int(2 * B * C * HWp * itemsize)),
    )(x, p2)

    if HWp != HW:
        out = out[:, :, :HW]
    return out.reshape(B, C, H, W)


# --------------------------------------------------------------------------
# Pure-JAX reference (mirrors the PyTorch forward, train-mode BN)
# --------------------------------------------------------------------------
def _reference(x, conv_w, gamma=1.0, beta=0.0, eps=1e-5):
    avg = jnp.mean(x, axis=1, keepdims=True)
    mx = jnp.max(x, axis=1, keepdims=True)
    att = conv_w[0] * avg + conv_w[1] * mx
    mu = jnp.mean(att)
    var = jnp.mean((att - mu) ** 2)
    att_n = (att - mu) / jnp.sqrt(var + eps) * gamma + beta
    return x * jax.nn.sigmoid(att_n)


if __name__ == "__main__":
    key = jax.random.PRNGKey(0)
    kx, kw = jax.random.split(key)

    # Small example shapes consistent with the module.
    B, C, H, W = 2, 4, 16, 16
    x = jax.random.normal(kx, (B, C, H, W), dtype=jnp.float32)

    # Conv2d(2, 1, 1, bias=False) weight: kaiming-uniform-like, fan_in = 2.
    bound = 1.0 / jnp.sqrt(2.0)
    conv_w = jax.random.uniform(kw, (2,), minval=-bound, maxval=bound,
                                dtype=jnp.float32)

    ref = _reference(x, conv_w)

    # Fused (small-input, VMEM-resident) path.
    out_fused = jax.block_until_ready(jax.jit(light_spatial_attention)(x, conv_w))
    assert out_fused.shape == (B, C, H, W)
    assert jnp.allclose(out_fused, ref, atol=1e-5, rtol=1e-5), "fused path mismatch"

    # Tiled two-pass path (forced) on the same input.
    tiled_fn = jax.jit(lambda a, b: light_spatial_attention(a, b, force_tiled=True))
    out_tiled = jax.block_until_ready(tiled_fn(x, conv_w))
    assert jnp.allclose(out_tiled, ref, atol=1e-5, rtol=1e-5), "tiled path mismatch"

    # Tiled path with non-128-divisible H*W (exercises the lane padding).
    H2, W2 = 10, 10
    x2 = jax.random.normal(kx, (B, C, H2, W2), dtype=jnp.float32)
    ref2 = _reference(x2, conv_w)
    out2 = jax.block_until_ready(tiled_fn(x2, conv_w))
    assert out2.shape == (B, C, H2, W2)
    assert jnp.allclose(out2, ref2, atol=1e-5, rtol=1e-5), "padded tiled path mismatch"

    print("KERNEL_OK")
</pallas_src>

<mosaic_0001>
module attributes {stable_mosaic.version = 11 : i64} {
  func.func @_fused_kernel(%arg0: memref<2x4x256xf32, #tpu.memory_space<vmem>>, %arg1: memref<5xf32, #tpu.memory_space<smem>>, %arg2: memref<2x4x256xf32, #tpu.memory_space<vmem>>) attributes {dimension_semantics = [], scalar_prefetch = 0 : i64, scratch_operands = 0 : i64, tpu.core_type = #tpu.core_type<tc>} {
    %c0 = arith.constant 0 : index
    %c0_0 = arith.constant 0 : index
    %c0_1 = arith.constant 0 : index
    %0 = vector.load %arg0[%c0, %c0_0, %c0_1] : memref<2x4x256xf32, #tpu.memory_space<vmem>>, vector<2x4x256xf32>
    %cst = arith.constant dense<0.000000e+00> : vector<2x256xf32>
    %1 = vector.multi_reduction <add>, %0, %cst [1] : vector<2x4x256xf32> to vector<2x256xf32>
    %2 = vector.shape_cast %1 : vector<2x256xf32> to vector<2x1x256xf32>
    %cst_2 = arith.constant dense<0xFF800000> : vector<2x256xf32>
    %3 = vector.multi_reduction <maximumf>, %0, %cst_2 [1] : vector<2x4x256xf32> to vector<2x256xf32>
    %4 = vector.shape_cast %3 : vector<2x256xf32> to vector<2x1x256xf32>
    %c0_3 = arith.constant 0 : index
    %5 = memref.load %arg1[%c0_3] : memref<5xf32, #tpu.memory_space<smem>>
    %6 = vector.broadcast %5 : f32 to vector<2x1x256xf32>
    %7 = arith.mulf %6, %2 : vector<2x1x256xf32>
    %c1 = arith.constant 1 : index
    %8 = memref.load %arg1[%c1] : memref<5xf32, #tpu.memory_space<smem>>
    %9 = vector.broadcast %8 : f32 to vector<2x1x256xf32>
    %10 = arith.mulf %9, %4 : vector<2x1x256xf32>
    %11 = arith.addf %7, %10 : vector<2x1x256xf32>
    %12 = vector.shape_cast %11 : vector<2x1x256xf32> to vector<1x2x1x256xf32>
    %cst_4 = arith.constant dense<0.000000e+00> : vector<1xf32>
    %13 = vector.multi_reduction <add>, %12, %cst_4 [1, 2, 3] : vector<1x2x1x256xf32> to vector<1xf32>
    %14 = vector.shape_cast %13 : vector<1xf32> to vector<1x1x1x1xf32>
    %15 = vector.extract %14[0, 0, 0, 0] : f32 from vector<1x1x1x1xf32>
    %cst_5 = arith.constant 5.120000e+02 : f32
    %16 = arith.divf %15, %cst_5 : f32
    %17 = vector.broadcast %16 : f32 to vector<2x1x256xf32>
    %18 = arith.subf %11, %17 : vector<2x1x256xf32>
    %19 = vector.broadcast %16 : f32 to vector<2x1x256xf32>
    %20 = arith.subf %11, %19 : vector<2x1x256xf32>
    %21 = arith.mulf %18, %20 : vector<2x1x256xf32>
    %22 = vector.shape_cast %21 : vector<2x1x256xf32> to vector<1x2x1x256xf32>
    %cst_6 = arith.constant dense<0.000000e+00> : vector<1xf32>
    %23 = vector.multi_reduction <add>, %22, %cst_6 [1, 2, 3] : vector<1x2x1x256xf32> to vector<1xf32>
    %24 = vector.shape_cast %23 : vector<1xf32> to vector<1x1x1x1xf32>
    %25 = vector.extract %24[0, 0, 0, 0] : f32 from vector<1x1x1x1xf32>
    %cst_7 = arith.constant 5.120000e+02 : f32
    %26 = arith.divf %25, %cst_7 : f32
    %27 = vector.broadcast %16 : f32 to vector<2x1x256xf32>
    %28 = arith.subf %11, %27 : vector<2x1x256xf32>
    %c4 = arith.constant 4 : index
    %29 = memref.load %arg1[%c4] : memref<5xf32, #tpu.memory_space<smem>>
    %30 = arith.addf %26, %29 : f32
    %31 = math.rsqrt %30 : f32
    %32 = vector.broadcast %31 : f32 to vector<2x1x256xf32>
    %33 = arith.mulf %28, %32 : vector<2x1x256xf32>
    %c2 = arith.constant 2 : index
    %34 = memref.load %arg1[%c2] : memref<5xf32, #tpu.memory_space<smem>>
    %35 = vector.broadcast %34 : f32 to vector<2x1x256xf32>
    %36 = arith.mulf %33, %35 : vector<2x1x256xf32>
    %c3 = arith.constant 3 : index
    %37 = memref.load %arg1[%c3] : memref<5xf32, #tpu.memory_space<smem>>
    %38 = vector.broadcast %37 : f32 to vector<2x1x256xf32>
    %39 = arith.addf %36, %38 : vector<2x1x256xf32>
    %40 = arith.negf %39 : vector<2x1x256xf32>
    %41 = math.exp %40 : vector<2x1x256xf32>
    %cst_8 = arith.constant 1.000000e+00 : f32
    %42 = vector.broadcast %cst_8 : f32 to vector<2x1x256xf32>
    %43 = arith.addf %42, %41 : vector<2x1x256xf32>
    %44 = arith.divf %42, %43 : vector<2x1x256xf32>
    %45 = vector.broadcast %44 : vector<2x1x256xf32> to vector<2x4x256xf32>
    %46 = arith.mulf %0, %45 : vector<2x4x256xf32>
    %c0_9 = arith.constant 0 : index
    %c0_10 = arith.constant 0 : index
    %c0_11 = arith.constant 0 : index
    %47 = vector.load %arg2[%c0_9, %c0_10, %c0_11] : memref<2x4x256xf32, #tpu.memory_space<vmem>>, vector<2x4x256xf32>
    tpu.vector_store %arg2[%c0_9, %c0_10, %c0_11], %46 {strides = array<i32>} : memref<2x4x256xf32, #tpu.memory_space<vmem>>, vector<2x4x256xf32>,
    return
  }
}

</mosaic_0001>

<llo_original>
// kernel: light_spatial_attention.1
$region0: #{light_spatial_attention.1}
  #allocation0 [shape = 'u32[]', space=smem, size = 0x4, offset = 0x4, fixed_abs, tag = 'smem constant byte address 0x4 - core index']
  #allocation1 [shape = 'u32[144,128]{1,0:T(1,128)}', space=vmem, size = 0x12000, scoped, tag = 'internal scratch']
  %s0 = inlined_call_operand.vmem [shape: f32[2,4,256], index: 0, kind: input, shape index: {}]
  %s1 = inlined_call_operand.vmem [shape: f32[5], index: 1, kind: input, shape index: {}]
  %s2 = inlined_call_operand.vmem [shape: f32[2,4,256], index: 2, kind: output, shape index: {}]
  %s3 = sld [smem:[#allocation0]]
  $region22: #{light_spatial_attention.1} parent=0
    _
  %s5 = ssub.s32 1, %s3
  %s6 = scalar_select 0, %s5, %s3
  $region1: #{light_spatial_attention.1} parent=0
    #allocation2 [shape = 'u8[512]{0}', space=smem, size = 0x200, scoped, tag = 'input window, operand 1, single buffered']
    #allocation3 [shape = 's32[1]{0}', space=sflag, size = 0x4, scoped, tag = 'scoped memory for light_spatial_attention.1']
    %7 = vsyncpa [#allocation3], 0
    // Predicated region
    $region2: #{light_spatial_attention.1} parent=1 // pred_check
      _
    $region3: #{light_spatial_attention.1} parent=1 // pred_check_branch
      %9 = sbr.rel (0) target = $region5
    $region4: #{light_spatial_attention.1} parent=1 // pred_region
      _
    $region5: #{light_spatial_attention.1} parent=1 // pred_fallthru
      _
    // Predicated region
    $region6: #{light_spatial_attention.1} parent=1 // pred_check
      _
    $region7: #{light_spatial_attention.1} parent=1 // pred_check_branch
      %11 = sbr.rel (0) target = $region9
    $region8: #{light_spatial_attention.1} parent=1 // pred_region
      %s13 = ssub.s32 16, 16
      %14 = vsyncadd [#allocation3], %s13
      %s16 = sshll.u32 %s1, 4
      %s17 = int_to_ptr.vmem [resolvable:$true] %s16
      %19 = dma.vmem_to_smem %s17, 16, [#allocation2], [#allocation3]
    $region9: #{light_spatial_attention.1} parent=1 // pred_fallthru
      _
    // Predicated region
    $region10: #{light_spatial_attention.1} parent=1 // pred_check
      _
    $region11: #{light_spatial_attention.1} parent=1 // pred_check_branch
      %21 = sbr.rel (0) target = $region13
    $region12: #{light_spatial_attention.1} parent=1 // pred_region
      %22 = dma.done [#allocation3], 16
    $region13: #{light_spatial_attention.1} parent=1 // pred_fallthru
      _
    %23 = sfence
    %v24 = vld [vmem:[%s0] sm:$0xff]
    %v25 = vld [vmem:[%s0 + $0x8] sm:$0xff]
    %v28 = vcombine.high %v24, %v24
    %v29 = vcombine.high %v25, %v25
    %vm32 = vcmask 1043456
    %v33 = vsel %vm32, %v24, 0.0
    %v34 = vrot.slane %v33, 4
    %v35 = vadd.f32 %v33, %v34
    %v36 = vrot.slane %v35, 2
    %v37 = vadd.f32 %v35, %v36
    %v38 = vrot.slane %v37, 1
    %v39 = vadd.f32 %v37, %v38
    %v40 = vsel %vm32, %v28, 0.0
    %v41 = vrot.slane %v40, 4
    %v42 = vadd.f32 %v40, %v41
    %v43 = vrot.slane %v42, 2
    %v44 = vadd.f32 %v42, %v43
    %v45 = vrot.slane %v44, 1
    %v46 = vadd.f32 %v44, %v45
    %v47 = vsel %vm32, %v25, 0.0
    %v48 = vrot.slane %v47, 4
    %v49 = vadd.f32 %v47, %v48
    %v50 = vrot.slane %v49, 2
    %v51 = vadd.f32 %v49, %v50
    %v52 = vrot.slane %v51, 1
    %v53 = vadd.f32 %v51, %v52
    %v54 = vsel %vm32, %v29, 0.0
    %v55 = vrot.slane %v54, 4
    %v56 = vadd.f32 %v54, %v55
    %v57 = vrot.slane %v56, 2
    %v58 = vadd.f32 %v56, %v57
    %v59 = vrot.slane %v58, 1
    %v60 = vadd.f32 %v58, %v59
    %v61 = vsel %vm32, %v24, -inf
    %v62 = vrot.slane %v61, 4
    %v63 = vmax.f32 %v61, %v62
    %v64 = vrot.slane %v63, 2
    %v65 = vmax.f32 %v63, %v64
    %v66 = vrot.slane %v65, 1
    %v67 = vmax.f32 %v65, %v66
    %v68 = vsel %vm32, %v28, -inf
    %v69 = vrot.slane %v68, 4
    %v70 = vmax.f32 %v68, %v69
    %v71 = vrot.slane %v70, 2
    %v72 = vmax.f32 %v70, %v71
    %v73 = vrot.slane %v72, 1
    %v74 = vmax.f32 %v72, %v73
    %v75 = vsel %vm32, %v25, -inf
    %v76 = vrot.slane %v75, 4
    %v77 = vmax.f32 %v75, %v76
    %v78 = vrot.slane %v77, 2
    %v79 = vmax.f32 %v77, %v78
    %v80 = vrot.slane %v79, 1
    %v81 = vmax.f32 %v79, %v80
    %v82 = vsel %vm32, %v29, -inf
    %v83 = vrot.slane %v82, 4
    %v84 = vmax.f32 %v82, %v83
    %v85 = vrot.slane %v84, 2
    %v86 = vmax.f32 %v84, %v85
    %v87 = vrot.slane %v86, 1
    %v88 = vmax.f32 %v86, %v87
    %s89 = sld [smem:[#allocation2]]
    %v90 = vstv %s89
    %v91 = vmul.f32 %v90, %v39
    %v92 = vmul.f32 %v90, %v46
    %v93 = vmul.f32 %v90, %v53
    %v94 = vmul.f32 %v90, %v60
    %s95 = sld [smem:[#allocation2 + $0x1]]
    %v96 = vstv %s95
    %v97 = vmul.f32 %v96, %v67
    %v98 = vmul.f32 %v96, %v74
    %v99 = vmul.f32 %v96, %v81
    %v100 = vmul.f32 %v96, %v88
    %v101 = vadd.f32 %v91, %v97
    %v102 = vadd.f32 %v92, %v98
    %v103 = vadd.f32 %v93, %v99
    %v104 = vadd.f32 %v94, %v100
    %vm105 = vcmask 1040384
    %v106 = vsel %vm105, %v101, 0.0
    %v107 = vsel %vm105, %v102, 0.0
    %v108 = vadd.f32 %v106, %v107
    %v109 = vsel %vm105, %v103, 0.0
    %v110 = vadd.f32 %v108, %v109
    %v111 = vsel %vm105, %v104, 0.0
    %v112 = vadd.f32 %v110, %v111
    %113 = vadd.xlane.f32.xlu0 %v112
    %v114 = vpop.xlane.xlu0 %113
    %v115 = vrot.slane %v114, 4
    %v116 = vadd.f32 %v114, %v115
    %v117 = vrot.slane %v116, 2
    %v118 = vadd.f32 %v116, %v117
    %v119 = vrot.slane %v118, 1
    %v120 = vadd.f32 %v118, %v119
    %s121 = vtos %v120
    %v122 = vrcp.pop 512.0
    %s123 = vtos %v122
    %s124 = smul.f32 %s121, %s123
    %v125 = vstv %s124
    %v126 = vsub.f32 %v101, %v125
    %v127 = vsub.f32 %v102, %v125
    %v128 = vsub.f32 %v103, %v125
    %v129 = vsub.f32 %v104, %v125
    %v130 = vmul.f32 %v126, %v126
    %v131 = vmul.f32 %v127, %v127
    %v132 = vmul.f32 %v128, %v128
    %v133 = vmul.f32 %v129, %v129
    %v134 = vsel %vm105, %v130, 0.0
    %v135 = vsel %vm105, %v131, 0.0
    %v136 = vadd.f32 %v134, %v135
    %v137 = vsel %vm105, %v132, 0.0
    %v138 = vadd.f32 %v136, %v137
    %v139 = vsel %vm105, %v133, 0.0
    %v140 = vadd.f32 %v138, %v139
    %141 = vadd.xlane.f32.xlu0 %v140
    %v142 = vpop.xlane.xlu0 %141
    %v143 = vrot.slane %v142, 4
    %v144 = vadd.f32 %v142, %v143
    %v145 = vrot.slane %v144, 2
    %v146 = vadd.f32 %v144, %v145
    %v147 = vrot.slane %v146, 1
    %v148 = vadd.f32 %v146, %v147
    %s149 = vtos %v148
    %v150 = vrcp.pop 512.0
    %s151 = vtos %v150
    %s152 = smul.f32 %s149, %s151
    %s153 = sld [smem:[#allocation2 + $0x4]]
    %s154 = sadd.f32 %s152, %s153
    %v155 = vstv %s154
    %v156 = vrsqrt.pop %v155
    %s157 = vtos %v156
    %v158 = vstv %s157
    %v159 = vmul.f32 %v126, %v158
    %v160 = vmul.f32 %v127, %v158
    %v161 = vmul.f32 %v128, %v158
    %v162 = vmul.f32 %v129, %v158
    %s163 = sld [smem:[#allocation2 + $0x2]]
    %v164 = vstv %s163
    %v165 = vmul.f32 %v159, %v164
    %v166 = vmul.f32 %v160, %v164
    %v167 = vmul.f32 %v161, %v164
    %v168 = vmul.f32 %v162, %v164
    %s169 = sld [smem:[#allocation2 + $0x3]]
    %v170 = vstv %s169
    %v171 = vadd.f32 %v165, %v170
    %v172 = vadd.f32 %v166, %v170
    %v173 = vadd.f32 %v167, %v170
    %v174 = vadd.f32 %v168, %v170
    %v175 = vxor.u32 %v171, 2147483648
    %v176 = vxor.u32 %v172, 2147483648
    %v177 = vxor.u32 %v173, 2147483648
    %v178 = vxor.u32 %v174, 2147483648
    %v179 = vmul.f32 %v175, 1.442695
    %v180 = vpow.pop %v179
    %v181 = vmul.f32 %v176, 1.442695
    %v182 = vpow.pop %v181
    %v183 = vmul.f32 %v177, 1.442695
    %v184 = vpow.pop %v183
    %v185 = vmul.f32 %v178, 1.442695
    %v186 = vpow.pop %v185
    %v187 = vadd.f32 %v180, 1.0
    %v188 = vadd.f32 %v182, 1.0
    %v189 = vadd.f32 %v184, 1.0
    %v190 = vadd.f32 %v186, 1.0
    %v191 = vrcp.pop %v187
    %v192 = vmul.f32 1.0, %v191
    %v193 = vrcp.pop %v188
    %v194 = vmul.f32 1.0, %v193
    %v195 = vrcp.pop %v189
    %v196 = vmul.f32 1.0, %v195
    %v197 = vrcp.pop %v190
    %v198 = vmul.f32 1.0, %v197
    %v203 = vcombine.low %v192, %v194
    %v204 = vcombine.low %v196, %v198
    %v207 = vmul.f32 %v24, %v203
    %v208 = vmul.f32 %v25, %v204
    %209 = vst [vmem:[%s2] sm:$0xff] %v207
    %210 = vst [vmem:[%s2 + $0x8] sm:$0xff] %v208
    // Predicated region
    $region14: #{light_spatial_attention.1} parent=1 // pred_check
      _
    $region15: #{light_spatial_attention.1} parent=1 // pred_check_branch
      %212 = sbr.rel (0) target = $region17
    $region16: #{light_spatial_attention.1} parent=1 // pred_region
      _
    $region17: #{light_spatial_attention.1} parent=1 // pred_fallthru
      _
    // Predicated region
    $region18: #{light_spatial_attention.1} parent=1 // pred_check
      _
    $region19: #{light_spatial_attention.1} parent=1 // pred_check_branch
      %214 = sbr.rel (0) target = $region21
    $region20: #{light_spatial_attention.1} parent=1 // pred_region
      _
    $region21: #{light_spatial_attention.1} parent=1 // pred_fallthru
      _
    %215 = vsyncpa [#allocation3], 1

</llo_original>
